<compile_context>
chip_gen: v7x
topology: tpu7x:2x2x1
jax: 0.10.0
libtpu: 0.0.40
codegen_flags: <defaults>
</compile_context>

<pallas_src>
import jax
import jax.numpy as jnp
from jax.experimental import pallas as pl
from jax.experimental.pallas import tpu as pltpu


def _fuse_params(params):
    """Collapse the 3 activation-free Linear layers into one affine map (exact)."""
    hp = jax.lax.Precision.HIGHEST
    w = jnp.dot(jnp.dot(params["w1"], params["w2"], precision=hp),
                params["w3"], precision=hp)
    b = jnp.dot(jnp.dot(params["b1"], params["w2"], precision=hp) + params["b2"],
                params["w3"], precision=hp) + params["b3"]
    return w, b                                     # [in, out] f32, [1, out] f32


def _make_affine_kernel(in_f: int, out_f: int):
    """out^T[o, :] = sum_k W[k, o] * x^T[k, :] + b[o]  (rank-1 VPU updates)."""
    def kernel(w_ref, b_ref, xt_ref, ot_ref):
        # w_ref: SMEM (in_f, out_f) f32   b_ref: SMEM (1, out_f) f32
        # xt_ref: VMEM (in_f, tile_n)     ot_ref: VMEM (out_f, tile_n) f32
        x = xt_ref[...]                             # (in_f, tile_n), lane-dense
        for o in range(out_f):                      # static unroll (out_f small)
            acc = x[0:1, :] * w_ref[0, o]           # scalar-broadcast vmul -> f32
            for k in range(1, in_f):
                acc = acc + x[k:k + 1, :] * w_ref[k, o]
            ot_ref[o:o + 1, :] = (acc + b_ref[0, o]).astype(ot_ref.dtype)
    return kernel


def _fused_affine_pallas(xt, w, b, *, tile_n):
    """xt: [in_f, N] with N a multiple of tile_n.  Returns out^T: [out_f, N] f32."""
    in_f, n = xt.shape
    out_f = w.shape[1]
    grid = (n // tile_n,)

    cost = pl.CostEstimate(
        flops=2 * n * in_f * out_f,
        transcendentals=0,
        bytes_accessed=n * in_f * xt.dtype.itemsize    # x^T read
                       + n * out_f * 4                 # out^T write
                       + (in_f + 1) * out_f * 4,       # W, b (SMEM, tiny)
    )

    return pl.pallas_call(
        _make_affine_kernel(in_f, out_f),
        out_shape=jax.ShapeDtypeStruct((out_f, n), jnp.float32),
        grid=grid,
        in_specs=[
            pl.BlockSpec(memory_space=pltpu.MemorySpace.SMEM),      # W: scalars
            pl.BlockSpec(memory_space=pltpu.MemorySpace.SMEM),      # b: scalars
            pl.BlockSpec((in_f, tile_n), lambda i: (0, i)),         # x^T tile (lane-dense)
        ],
        out_specs=pl.BlockSpec((out_f, tile_n), lambda i: (0, i)),  # out^T tile (lane-dense)
        compiler_params=pltpu.CompilerParams(
            dimension_semantics=("parallel",),   # shard batch tiles across TCs (v7x)
        ),
        cost_estimate=cost,
    )(w, b, xt)


def blob_model_forward(x, params, *, compute_dtype=jnp.float32, tile_n=512):
    """Forward pass of BlobModelV1.

    x:      [N, input_features] float32
    params: w1 [in,h], b1 [1,h], w2 [h,h], b2 [1,h], w3 [h,out], b3 [1,out]
            (weights stored pre-transposed as [in, out], i.e. PyTorch W.T)
    compute_dtype: f32 (default, v5e-safe) or bf16 for the x stream on v6e/v7x.
    tile_n: rows per grid step (multiple of 128); raise to 4096-8192 on v7x.
    """
    n, _ = x.shape
    w_fused, b_fused = _fuse_params(params)

    def xla_affine(rows):
        return (jnp.dot(rows, w_fused, preferred_element_type=jnp.float32)
                + b_fused).astype(jnp.float32)

    # Tiny batches: custom-call dispatch + DMA overhead dominates -> plain XLA.
    if n < 2 * tile_n:
        return xla_affine(x)

    n_main = (n // tile_n) * tile_n
    xt = x[:n_main].T.astype(compute_dtype)          # [in_f, n_main], lane-dense
    out_t = _fused_affine_pallas(xt, w_fused, b_fused, tile_n=tile_n)
    out_main = out_t.T                               # [n_main, out_f] f32

    if n_main == n:
        return out_main
    # Ragged tail (< tile_n rows): tiny, handled by XLA to avoid pad copies.
    return jnp.concatenate([out_main, xla_affine(x[n_main:])], axis=0)


def init_params(key, input_features, output_features, hidden_units=8):
    """Deterministic init mirroring nn.Linear default (uniform +/- 1/sqrt(fan_in)).

    Weights stored pre-transposed as [in, out] so forward computes x @ W + b,
    matching PyTorch's x @ W.T + b with W of shape [out, in].
    """
    def linear_init(k, fan_in, fan_out):
        kw, kb = jax.random.split(k)
        bound = 1.0 / jnp.sqrt(float(fan_in))
        w = jax.random.uniform(kw, (fan_in, fan_out), jnp.float32, -bound, bound)
        b = jax.random.uniform(kb, (1, fan_out), jnp.float32, -bound, bound)
        return w, b

    k1, k2, k3 = jax.random.split(key, 3)
    w1, b1 = linear_init(k1, input_features, hidden_units)
    w2, b2 = linear_init(k2, hidden_units, hidden_units)
    w3, b3 = linear_init(k3, hidden_units, output_features)
    return {"w1": w1, "b1": b1, "w2": w2, "b2": b2, "w3": w3, "b3": b3}


def _reference_forward(x, p):
    hp = jax.lax.Precision.HIGHEST
    h1 = jnp.dot(x, p["w1"], precision=hp) + p["b1"]
    h2 = jnp.dot(h1, p["w2"], precision=hp) + p["b2"]
    return jnp.dot(h2, p["w3"], precision=hp) + p["b3"]


if __name__ == "__main__":
    key = jax.random.PRNGKey(0)
    k_x, k_p = jax.random.split(key)

    input_features = 2    # 2-D blob coordinates
    output_features = 4   # number of classes
    hidden_units = 8
    batch = 2048          # >= 2*tile_n so the Pallas kernel path runs (grid=4)

    x = jax.random.normal(k_x, (batch, input_features), jnp.float32)
    params = init_params(k_p, input_features, output_features, hidden_units)

    out = blob_model_forward(x, params, tile_n=512)   # f32 path (portable / v5e-safe)
    out = jax.block_until_ready(out)

    ref = _reference_forward(x, params)
    assert out.shape == (batch, output_features)
    assert jnp.allclose(out, ref, atol=1e-3, rtol=1e-3), \
        f"max abs err {jnp.max(jnp.abs(out - ref))}"

    print("KERNEL_OK")
</pallas_src>

<mosaic_0001>
module attributes {stable_mosaic.version = 11 : i64} {
  func.func @kernel(%arg0: i32, %arg1: memref<2x4xf32, #tpu.memory_space<smem>>, %arg2: memref<1x4xf32, #tpu.memory_space<smem>>, %arg3: memref<2x512xf32, #tpu.memory_space<vmem>>, %arg4: memref<4x512xf32, #tpu.memory_space<vmem>>) attributes {dimension_semantics = [#tpu.dimension_semantics<parallel>], iteration_bounds = array<i64: 4>, scalar_prefetch = 0 : i64, scratch_operands = 0 : i64, tpu.core_type = #tpu.core_type<tc>, window_params = [{transform_indices = @transform_0, window_bounds = array<i64: 2, 4>}, {transform_indices = @transform_1, window_bounds = array<i64: 1, 4>}, {transform_indices = @transform_2, window_bounds = array<i64: 2, 512>}, {transform_indices = @transform_3, window_bounds = array<i64: 4, 512>}]} {
    %c0 = arith.constant 0 : index
    %c0_0 = arith.constant 0 : index
    %0 = vector.load %arg3[%c0, %c0_0] : memref<2x512xf32, #tpu.memory_space<vmem>>, vector<2x512xf32>
    %1 = vector.extract_strided_slice %0 {offsets = [0, 0], sizes = [1, 512], strides = [1, 1]} : vector<2x512xf32> to vector<1x512xf32>
    %c0_1 = arith.constant 0 : index
    %c0_2 = arith.constant 0 : index
    %2 = memref.load %arg1[%c0_1, %c0_2] : memref<2x4xf32, #tpu.memory_space<smem>>
    %3 = vector.broadcast %2 : f32 to vector<1x512xf32>
    %4 = arith.mulf %1, %3 : vector<1x512xf32>
    %5 = vector.extract_strided_slice %0 {offsets = [1, 0], sizes = [1, 512], strides = [1, 1]} : vector<2x512xf32> to vector<1x512xf32>
    %c1 = arith.constant 1 : index
    %c0_3 = arith.constant 0 : index
    %6 = memref.load %arg1[%c1, %c0_3] : memref<2x4xf32, #tpu.memory_space<smem>>
    %7 = vector.broadcast %6 : f32 to vector<1x512xf32>
    %8 = arith.mulf %5, %7 : vector<1x512xf32>
    %9 = arith.addf %4, %8 : vector<1x512xf32>
    %c0_4 = arith.constant 0 : index
    %c0_5 = arith.constant 0 : index
    %10 = memref.load %arg2[%c0_4, %c0_5] : memref<1x4xf32, #tpu.memory_space<smem>>
    %11 = vector.broadcast %10 : f32 to vector<1x512xf32>
    %12 = arith.addf %9, %11 : vector<1x512xf32>
    %c0_6 = arith.constant 0 : index
    %c0_7 = arith.constant 0 : index
    %13 = vector.load %arg4[%c0_6, %c0_7] : memref<4x512xf32, #tpu.memory_space<vmem>>, vector<1x512xf32>
    tpu.vector_store %arg4[%c0_6, %c0_7], %12 {strides = array<i32>} : memref<4x512xf32, #tpu.memory_space<vmem>>, vector<1x512xf32>,
    %14 = vector.extract_strided_slice %0 {offsets = [0, 0], sizes = [1, 512], strides = [1, 1]} : vector<2x512xf32> to vector<1x512xf32>
    %c0_8 = arith.constant 0 : index
    %c1_9 = arith.constant 1 : index
    %15 = memref.load %arg1[%c0_8, %c1_9] : memref<2x4xf32, #tpu.memory_space<smem>>
    %16 = vector.broadcast %15 : f32 to vector<1x512xf32>
    %17 = arith.mulf %14, %16 : vector<1x512xf32>
    %18 = vector.extract_strided_slice %0 {offsets = [1, 0], sizes = [1, 512], strides = [1, 1]} : vector<2x512xf32> to vector<1x512xf32>
    %c1_10 = arith.constant 1 : index
    %c1_11 = arith.constant 1 : index
    %19 = memref.load %arg1[%c1_10, %c1_11] : memref<2x4xf32, #tpu.memory_space<smem>>
    %20 = vector.broadcast %19 : f32 to vector<1x512xf32>
    %21 = arith.mulf %18, %20 : vector<1x512xf32>
    %22 = arith.addf %17, %21 : vector<1x512xf32>
    %c0_12 = arith.constant 0 : index
    %c1_13 = arith.constant 1 : index
    %23 = memref.load %arg2[%c0_12, %c1_13] : memref<1x4xf32, #tpu.memory_space<smem>>
    %24 = vector.broadcast %23 : f32 to vector<1x512xf32>
    %25 = arith.addf %22, %24 : vector<1x512xf32>
    %c1_14 = arith.constant 1 : index
    %c0_15 = arith.constant 0 : index
    %26 = vector.load %arg4[%c1_14, %c0_15] : memref<4x512xf32, #tpu.memory_space<vmem>>, vector<1x512xf32>
    tpu.vector_store %arg4[%c1_14, %c0_15], %25 {strides = array<i32>} : memref<4x512xf32, #tpu.memory_space<vmem>>, vector<1x512xf32>,
    %27 = vector.extract_strided_slice %0 {offsets = [0, 0], sizes = [1, 512], strides = [1, 1]} : vector<2x512xf32> to vector<1x512xf32>
    %c0_16 = arith.constant 0 : index
    %c2 = arith.constant 2 : index
    %28 = memref.load %arg1[%c0_16, %c2] : memref<2x4xf32, #tpu.memory_space<smem>>
    %29 = vector.broadcast %28 : f32 to vector<1x512xf32>
    %30 = arith.mulf %27, %29 : vector<1x512xf32>
    %31 = vector.extract_strided_slice %0 {offsets = [1, 0], sizes = [1, 512], strides = [1, 1]} : vector<2x512xf32> to vector<1x512xf32>
    %c1_17 = arith.constant 1 : index
    %c2_18 = arith.constant 2 : index
    %32 = memref.load %arg1[%c1_17, %c2_18] : memref<2x4xf32, #tpu.memory_space<smem>>
    %33 = vector.broadcast %32 : f32 to vector<1x512xf32>
    %34 = arith.mulf %31, %33 : vector<1x512xf32>
    %35 = arith.addf %30, %34 : vector<1x512xf32>
    %c0_19 = arith.constant 0 : index
    %c2_20 = arith.constant 2 : index
    %36 = memref.load %arg2[%c0_19, %c2_20] : memref<1x4xf32, #tpu.memory_space<smem>>
    %37 = vector.broadcast %36 : f32 to vector<1x512xf32>
    %38 = arith.addf %35, %37 : vector<1x512xf32>
    %c2_21 = arith.constant 2 : index
    %c0_22 = arith.constant 0 : index
    %39 = vector.load %arg4[%c2_21, %c0_22] : memref<4x512xf32, #tpu.memory_space<vmem>>, vector<1x512xf32>
    tpu.vector_store %arg4[%c2_21, %c0_22], %38 {strides = array<i32>} : memref<4x512xf32, #tpu.memory_space<vmem>>, vector<1x512xf32>,
    %40 = vector.extract_strided_slice %0 {offsets = [0, 0], sizes = [1, 512], strides = [1, 1]} : vector<2x512xf32> to vector<1x512xf32>
    %c0_23 = arith.constant 0 : index
    %c3 = arith.constant 3 : index
    %41 = memref.load %arg1[%c0_23, %c3] : memref<2x4xf32, #tpu.memory_space<smem>>
    %42 = vector.broadcast %41 : f32 to vector<1x512xf32>
    %43 = arith.mulf %40, %42 : vector<1x512xf32>
    %44 = vector.extract_strided_slice %0 {offsets = [1, 0], sizes = [1, 512], strides = [1, 1]} : vector<2x512xf32> to vector<1x512xf32>
    %c1_24 = arith.constant 1 : index
    %c3_25 = arith.constant 3 : index
    %45 = memref.load %arg1[%c1_24, %c3_25] : memref<2x4xf32, #tpu.memory_space<smem>>
    %46 = vector.broadcast %45 : f32 to vector<1x512xf32>
    %47 = arith.mulf %44, %46 : vector<1x512xf32>
    %48 = arith.addf %43, %47 : vector<1x512xf32>
    %c0_26 = arith.constant 0 : index
    %c3_27 = arith.constant 3 : index
    %49 = memref.load %arg2[%c0_26, %c3_27] : memref<1x4xf32, #tpu.memory_space<smem>>
    %50 = vector.broadcast %49 : f32 to vector<1x512xf32>
    %51 = arith.addf %48, %50 : vector<1x512xf32>
    %c3_28 = arith.constant 3 : index
    %c0_29 = arith.constant 0 : index
    %52 = vector.load %arg4[%c3_28, %c0_29] : memref<4x512xf32, #tpu.memory_space<vmem>>, vector<1x512xf32>
    tpu.vector_store %arg4[%c3_28, %c0_29], %51 {strides = array<i32>} : memref<4x512xf32, #tpu.memory_space<vmem>>, vector<1x512xf32>,
    return
  }
  func.func @transform_0(%arg0: i32) -> (i32, i32) {
    %c0_i32 = arith.constant 0 : i32
    %c0_i32_0 = arith.constant 0 : i32
    %c0_i32_1 = arith.constant 0 : i32
    return %c0_i32, %c0_i32_0 : i32, i32
  }
  func.func @transform_1(%arg0: i32) -> (i32, i32) {
    %c0_i32 = arith.constant 0 : i32
    %c0_i32_0 = arith.constant 0 : i32
    %c0_i32_1 = arith.constant 0 : i32
    return %c0_i32, %c0_i32_0 : i32, i32
  }
  func.func @transform_2(%arg0: i32) -> (i32, i32) {
    %c0_i32 = arith.constant 0 : i32
    %c0_i32_0 = arith.constant 0 : i32
    return %c0_i32, %arg0 : i32, i32
  }
  func.func @transform_3(%arg0: i32) -> (i32, i32) {
    %c0_i32 = arith.constant 0 : i32
    %c0_i32_0 = arith.constant 0 : i32
    return %c0_i32, %arg0 : i32, i32
  }
}

</mosaic_0001>

<llo_original>
// kernel: tpu_custom_call.1
$region0: #{tpu_custom_call.1}
  #allocation0 [shape = 'u32[]', space=smem, size = 0x4, offset = 0x4, fixed_abs, tag = 'smem constant byte address 0x4 - core index']
  #allocation1 [shape = 'u32[144,128]{1,0:T(1,128)}', space=vmem, size = 0x12000, scoped, tag = 'internal scratch']
  %s0 = inlined_call_operand.hbm [shape: f32[2,4], index: 0, kind: input, shape index: {}]
  %s1 = inlined_call_operand.vmem [shape: f32[1,4], index: 1, kind: input, shape index: {}]
  %s2 = inlined_call_operand.hbm [shape: f32[2,2048], index: 2, kind: input, shape index: {}]
  %s3 = inlined_call_operand.hbm [shape: f32[4,2048], index: 3, kind: output, shape index: {}]
  %s4 = sld [smem:[#allocation0]]
  $region57: #{tpu_custom_call.1} parent=0
    _
  %s6 = ssub.s32 1, %s4
  %s7 = scalar_select 0, %s6, %s4
  $region1: #{tpu_custom_call.1} parent=0
    #allocation2 [shape = 'u8[1024]{0}', space=smem, size = 0x400, scoped, tag = 'input window, operand 0, single buffered']
    #allocation3 [shape = 's32[2]{0}', space=sflag, size = 0x8, scoped, tag = 'scoped memory for tpu_custom_call.1']
    #allocation4 [shape = 's32[2]{0}', space=sflag, size = 0x8, scoped, tag = 'scoped memory for tpu_custom_call.1']
    #allocation5 [shape = 's32[2]{0}', space=sflag, size = 0x8, scoped, tag = 'scoped memory for tpu_custom_call.1']
    #allocation6 [shape = 's32[2]{0}', space=sflag, size = 0x8, scoped, tag = 'scoped memory for tpu_custom_call.1']
    #allocation7 [shape = 'u8[512]{0}', space=smem, size = 0x200, scoped, tag = 'input window, operand 1, single buffered']
    #allocation8 [shape = 'u8[8192]{0}', space=vmem, size = 0x2000, scoped, tag = 'input window, operand 2']
    #allocation9 [shape = 'u8[16384]{0}', space=vmem, size = 0x4000, scoped, tag = 'output window, operand 0']
    %8 = vsyncpa [#allocation5], 0
    %9 = vsyncpa [#allocation6], 0
    %10 = vsyncpa [#allocation3], 0
    %s11 = scalar_lea.sflag [#allocation3], 1
    %12 = vsyncpa %s11, 0
    %13 = vsyncpa [#allocation4], 0
    %s14 = scalar_lea.sflag [#allocation4], 1
    %15 = vsyncpa %s14, 0
    loop: start=0, step=1, limit=6
    $region2: #{tpu_custom_call.1} parent=1 // loop_pre_header
      _
    $region3: #{tpu_custom_call.1} parent=1 // loop_header
      %s17 = sphi 0, %s21
      %p18 = scmp.ge.s32.totalorder %s17, 6
      %s25 = sphi 0, %s25
      %s27 = sphi 0, %s25
      %s28 = sphi 0, %s27
      %s42 = sphi 0, %s28
      %s46 = sphi 0, %s46
      %s48 = sphi 0, %s46
      %s49 = sphi 0, %s48
      %s63 = sphi 0, %s49
      %s69 = sphi 0, %s71
      %s72 = sphi 0, %s69
      %s73 = sphi 0, %s72
      %s89 = sphi 0, %s73
      %s95 = sphi 0, %s97
      %s98 = sphi 0, %s95
      %s99 = sphi 0, %s98
      %s115 = sphi 0, %s99
    $region4: #{tpu_custom_call.1} parent=1 // loop_header_branch
      %20 = sbr.rel (%p18) target = $region8
    $region5: #{tpu_custom_call.1} parent=1 // loop_body
      %s22 = ssub.s32 %s17, 1
      %s23 = ssub.s32 %s17, 2
      %s24 = sadd.s32 %s17, 1
      %s26 = sadd.s32 %s25, 1
      %p29 = scmp.eq.s32.totalorder %s17, 3
      %p30 = scmp.ne.s32.totalorder %s25, %s27
      %p31 = scmp.eq.s32.totalorder %s17, 0
      %p32 = por %p30, %p31
      %p33 = scmp.ne.s32.totalorder %s25, %s27
      %p34 = scmp.eq.s32.totalorder %s22, 3
      %p35 = por %p33, %p34
      %p36 = scmp.ne.s32.totalorder %s27, %s28
      %p37 = scmp.eq.s32.totalorder %s22, 0
      %p38 = por %p36, %p37
      %p39 = scmp.ne.s32.totalorder %s27, %s28
      %p40 = scmp.eq.s32.totalorder %s23, 3
      %p41 = por %p39, %p40
      %p43 = scmp.ne.s32.totalorder %s28, %s42
      %p44 = scmp.eq.s32.totalorder %s23, 0
      %p45 = por %p43, %p44
      %s47 = sadd.s32 %s46, 1
      %p50 = scmp.eq.s32.totalorder %s17, 3
      %p51 = scmp.ne.s32.totalorder %s46, %s48
      %p52 = scmp.eq.s32.totalorder %s17, 0
      %p53 = por %p51, %p52
      %p54 = scmp.ne.s32.totalorder %s46, %s48
      %p55 = scmp.eq.s32.totalorder %s22, 3
      %p56 = por %p54, %p55
      %p57 = scmp.ne.s32.totalorder %s48, %s49
      %p58 = scmp.eq.s32.totalorder %s22, 0
      %p59 = por %p57, %p58
      %p60 = scmp.ne.s32.totalorder %s48, %s49
      %p61 = scmp.eq.s32.totalorder %s23, 3
      %p62 = por %p60, %p61
      %p64 = scmp.ne.s32.totalorder %s49, %s63
      %p65 = scmp.eq.s32.totalorder %s23, 0
      %p66 = por %p64, %p65
      %s67 = ssub.s32 %s17, %s24
      %p68 = scmp.eq.s32.totalorder %s67, 0
      %s70 = sadd.s32 %s69, 1
      %s71 = scalar_select %p68, %s69, %s70
      %p74 = pneg %p68
      %p75 = scmp.eq.s32.totalorder %s17, 3
      %p76 = por %p74, %p75
      %p77 = scmp.ne.s32.totalorder %s69, %s72
      %p78 = scmp.eq.s32.totalorder %s17, 0
      %p79 = por %p77, %p78
      %p80 = scmp.ne.s32.totalorder %s69, %s72
      %p81 = scmp.eq.s32.totalorder %s22, 3
      %p82 = por %p80, %p81
      %p83 = scmp.ne.s32.totalorder %s72, %s73
      %p84 = scmp.eq.s32.totalorder %s22, 0
      %p85 = por %p83, %p84
      %p86 = scmp.ne.s32.totalorder %s72, %s73
      %p87 = scmp.eq.s32.totalorder %s23, 3
      %p88 = por %p86, %p87
      %p90 = scmp.ne.s32.totalorder %s73, %s89
      %p91 = scmp.eq.s32.totalorder %s23, 0
      %p92 = por %p90, %p91
      %s93 = ssub.s32 %s17, %s24
      %p94 = scmp.eq.s32.totalorder %s93, 0
      %s96 = sadd.s32 %s95, 1
      %s97 = scalar_select %p94, %s95, %s96
      %p100 = pneg %p94
      %p101 = scmp.eq.s32.totalorder %s17, 3
      %p102 = por %p100, %p101
      %p103 = scmp.ne.s32.totalorder %s95, %s98
      %p104 = scmp.eq.s32.totalorder %s17, 0
      %p105 = por %p103, %p104
      %p106 = scmp.ne.s32.totalorder %s95, %s98
      %p107 = scmp.eq.s32.totalorder %s22, 3
      %p108 = por %p106, %p107
      %p109 = scmp.ne.s32.totalorder %s98, %s99
      %p110 = scmp.eq.s32.totalorder %s22, 0
      %p111 = por %p109, %p110
      %p112 = scmp.ne.s32.totalorder %s98, %s99
      %p113 = scmp.eq.s32.totalorder %s23, 3
      %p114 = por %p112, %p113
      %p116 = scmp.ne.s32.totalorder %s99, %s115
      %p117 = scmp.eq.s32.totalorder %s23, 0
      %p118 = por %p116, %p117
      %p119 = scmp.le.s32.totalorder 1, %s17
      %p120 = scmp.lt.s32.totalorder %s17, 5
      %p121 = pnand %p119, %p120
      %p122 = pneg %p121
      // Predicated region
      $region9: #{tpu_custom_call.1} parent=5 // pred_check
        _
      $region10: #{tpu_custom_call.1} parent=5 // pred_check_branch
        %124 = sbr.rel (%p121) target = $region12
      $region11: #{tpu_custom_call.1} parent=5 // pred_region
        %s125 = ssub.s32 %s17, 1
        // Predicated region
        $region13: #{tpu_custom_call.1} parent=11 // pred_check
          %p126 = pneg %p38
        $region14: #{tpu_custom_call.1} parent=11 // pred_check_branch
          %128 = sbr.rel (%p126) target = $region16
        $region15: #{tpu_custom_call.1} parent=11 // pred_region
          %s130 = ssub.s32 32, 32
          %131 = vsyncadd [#allocation5], %s130
          %134 = dma.hbm_to_smem %s0, 32, [#allocation2], [#allocation5]
        $region16: #{tpu_custom_call.1} parent=11 // pred_fallthru
          _
        // Predicated region
        $region17: #{tpu_custom_call.1} parent=11 // pred_check
          %p135 = pneg %p59
        $region18: #{tpu_custom_call.1} parent=11 // pred_check_branch
          %137 = sbr.rel (%p135) target = $region20
        $region19: #{tpu_custom_call.1} parent=11 // pred_region
          %s139 = ssub.s32 16, 16
          %140 = vsyncadd [#allocation6], %s139
          %s142 = sshll.u32 %s1, 4
          %s143 = int_to_ptr.vmem [resolvable:$true] %s142
          %145 = dma.vmem_to_smem %s143, 16, [#allocation7], [#allocation6]
        $region20: #{tpu_custom_call.1} parent=11 // pred_fallthru
          _
      $region12: #{tpu_custom_call.1} parent=5 // pred_fallthru
        _
      %p146 = scmp.lt.s32.totalorder %s17, 4
      // Predicated region
      $region21: #{tpu_custom_call.1} parent=5 // pred_check
        %p147 = pneg %p146
      $region22: #{tpu_custom_call.1} parent=5 // pred_check_branch
        %149 = sbr.rel (%p147) target = $region24
      $region23: #{tpu_custom_call.1} parent=5 // pred_region
        // Predicated region
        $region25: #{tpu_custom_call.1} parent=23 // pred_check
          %p150 = pneg %p79
        $region26: #{tpu_custom_call.1} parent=23 // pred_check_branch
          %152 = sbr.rel (%p150) target = $region28
        $region27: #{tpu_custom_call.1} parent=23 // pred_region
          %s153 = sand.u32 %s69, 1
          %s154 = scalar_lea.sflag [#allocation3], %s153
          %s155 = sand.u32 %s69, 1
          %s156 = smul.addr %s155, 8
          %s157 = scalar_lea.vmem [#allocation8], %s156
          %s158 = smul.u32 4, %s17
          %s160 = ssub.s32 128, 128
          %161 = vsyncadd %s154, %s160
          %s162 = smul.addr %s158, 32
          %s163 = scalar_lea.hbm %s2, %s162
          %s165 = sshll.u32 %s157, 4
          %s166 = int_to_ptr.vmem [resolvable:$true] %s165
          %168 = dma.hbm_to_vmem [thread:$0]  %s163, 128, %s166, %s154
        $region28: #{tpu_custom_call.1} parent=23 // pred_fallthru
          _
      $region24: #{tpu_custom_call.1} parent=5 // pred_fallthru
        _
      %p169 = scmp.le.s32.totalorder 1, %s17
      %p170 = scmp.lt.s32.totalorder %s17, 5
      %p171 = pnand %p169, %p170
      %p172 = pneg %p171
      // Predicated region
      $region29: #{tpu_custom_call.1} parent=5 // pred_check
        _
      $region30: #{tpu_custom_call.1} parent=5 // pred_check_branch
        %174 = sbr.rel (%p171) target = $region32
      $region31: #{tpu_custom_call.1} parent=5 // pred_region
        %s175 = ssub.s32 %s17, 1
        // Predicated region
        $region33: #{tpu_custom_call.1} parent=31 // pred_check
          %p176 = pneg %p38
        $region34: #{tpu_custom_call.1} parent=31 // pred_check_branch
          %178 = sbr.rel (%p176) target = $region36
        $region35: #{tpu_custom_call.1} parent=31 // pred_region
          %179 = dma.done [#allocation5], 32
        $region36: #{tpu_custom_call.1} parent=31 // pred_fallthru
          _
        // Predicated region
        $region37: #{tpu_custom_call.1} parent=31 // pred_check
          %p180 = pneg %p59
        $region38: #{tpu_custom_call.1} parent=31 // pred_check_branch
          %182 = sbr.rel (%p180) target = $region40
        $region39: #{tpu_custom_call.1} parent=31 // pred_region
          %183 = dma.done [#allocation6], 16
        $region40: #{tpu_custom_call.1} parent=31 // pred_fallthru
          _
        %s184 = sand.u32 %s72, 1
        %s185 = scalar_lea.sflag [#allocation3], %s184
        %s186 = sand.u32 %s72, 1
        %s187 = smul.addr %s186, 8
        %s188 = scalar_lea.vmem [#allocation8], %s187
        // Predicated region
        $region41: #{tpu_custom_call.1} parent=31 // pred_check
          %p189 = pneg %p85
        $region42: #{tpu_custom_call.1} parent=31 // pred_check_branch
          %191 = sbr.rel (%p189) target = $region44
        $region43: #{tpu_custom_call.1} parent=31 // pred_region
          %192 = dma.done %s185, 128
        $region44: #{tpu_custom_call.1} parent=31 // pred_fallthru
          _
        %193 = sfence
        %p194 = pneg %p38
        %p195 = pneg %p35
        %p196 = pneg %p59
        %p197 = pneg %p56
        %s198 = sand.u32 %s72, 1
        %s199 = scalar_lea.sflag [#allocation3], %s198
        %s200 = sand.u32 %s72, 1
        %s201 = smul.addr %s200, 8
        %s202 = scalar_lea.vmem [#allocation8], %s201
        %p203 = pneg %p85
        %p204 = pneg %p82
        %p205 = pneg %p111
        %p206 = pneg %p108
        %s207 = sand.u32 %s98, 1
        %s208 = scalar_lea.sflag [#allocation4], %s207
        %s209 = sand.u32 %s98, 1
        %s210 = smul.addr %s209, 16
        %s211 = scalar_lea.vmem [#allocation9], %s210
        %s212 = smul.u32 4, %s22
        %s213 = smul.u32 4, %s22
        %v214 = vld [vmem:[%s188] sm:$0xff]
        %s215 = sld [smem:[#allocation2]]
        %v216 = vstv %s215
        %v217 = vmul.f32 %v214, %v216
        %s218 = sld [smem:[#allocation2 + $0x80]]
        %v219 = vstv %s218
        %v220 = vmul.f32 %v214, %v219
        %v222 = vrot.slane %v220, 7
        %v223 = vrot.slane %v222, 2
        %v225 = vadd.f32 %v217, %v223
        %s226 = sld [smem:[#allocation7]]
        %v227 = vstv %s226
        %v228 = vadd.f32 %v225, %v227
        %v231 = vunpack.c.l.s4 1966171168
        %v232 = vunpack.c.0.s8 %v231
        %v233 = vlaneseq
        %v234 = vshrl.u32 %v233, 7
        %v235 = vsub.s32 %v232, %v234
        %v236 = vrot.slane %v228, %v235
        %v238 = vlaneseq
        %vm239 = vcmp.ge.s32.totalorder %v238, 0
        %vm240 = vcmp.lt.s32.totalorder %v238, 512
        %vm241 = vmand %vm239, %vm240
        %242 = vst.msk [vmem:[%s211] ss:$4 sm:$0xf] %vm241, %v236
        %s243 = sld [smem:[#allocation2 + $0x1]]
        %v244 = vstv %s243
        %v245 = vmul.f32 %v214, %v244
        %s246 = sld [smem:[#allocation2 + $0x81]]
        %v247 = vstv %s246
        %v248 = vmul.f32 %v214, %v247
        %v250 = vrot.slane %v248, 7
        %v251 = vrot.slane %v250, 2
        %v253 = vadd.f32 %v245, %v251
        %s254 = sld [smem:[#allocation7 + $0x1]]
        %v255 = vstv %s254
        %v256 = vadd.f32 %v253, %v255
        %v259 = vunpack.c.l.s4 1966171168
        %v260 = vunpack.c.0.s8 %v259
        %v261 = vlaneseq
        %v262 = vshrl.u32 %v261, 7
        %v263 = vsub.s32 %v260, %v262
        %v264 = vrot.slane %v256, %v263
        %s266 = scalar_lea.vmem %s211, 1 [#allocation9]
        %267 = vst.msk [vmem:[%s266] ss:$4 sm:$0xf] %vm241, %v264
        %s268 = sld [smem:[#allocation2 + $0x2]]
        %v269 = vstv %s268
        %v270 = vmul.f32 %v214, %v269
        %s271 = sld [smem:[#allocation2 + $0x82]]
        %v272 = vstv %s271
        %v273 = vmul.f32 %v214, %v272
        %v275 = vrot.slane %v273, 7
        %v276 = vrot.slane %v275, 2
        %v278 = vadd.f32 %v270, %v276
        %s279 = sld [smem:[#allocation7 + $0x2]]
        %v280 = vstv %s279
        %v281 = vadd.f32 %v278, %v280
        %v284 = vunpack.c.l.s4 1966171168
        %v285 = vunpack.c.0.s8 %v284
        %v286 = vlaneseq
        %v287 = vshrl.u32 %v286, 7
        %v288 = vsub.s32 %v285, %v287
        %v289 = vrot.slane %v281, %v288
        %s291 = scalar_lea.vmem %s211, 2 [#allocation9]
        %292 = vst.msk [vmem:[%s291] ss:$4 sm:$0xf] %vm241, %v289
        %s293 = sld [smem:[#allocation2 + $0x3]]
        %v294 = vstv %s293
        %v295 = vmul.f32 %v214, %v294
        %s296 = sld [smem:[#allocation2 + $0x83]]
        %v297 = vstv %s296
        %v298 = vmul.f32 %v214, %v297
        %v300 = vrot.slane %v298, 7
        %v301 = vrot.slane %v300, 2
        %v303 = vadd.f32 %v295, %v301
        %s304 = sld [smem:[#allocation7 + $0x3]]
        %v305 = vstv %s304
        %v306 = vadd.f32 %v303, %v305
        %v309 = vunpack.c.l.s4 1966171168
        %v310 = vunpack.c.0.s8 %v309
        %v311 = vlaneseq
        %v312 = vshrl.u32 %v311, 7
        %v313 = vsub.s32 %v310, %v312
        %v314 = vrot.slane %v306, %v313
        %s316 = scalar_lea.vmem %s211, 3 [#allocation9]
        %317 = vst.msk [vmem:[%s316] ss:$4 sm:$0xf] %vm241, %v314
        %s318 = sand.u32 %s98, 1
        %s319 = scalar_lea.sflag [#allocation4], %s318
        %s320 = sand.u32 %s98, 1
        %s321 = smul.addr %s320, 16
        %s322 = scalar_lea.vmem [#allocation9], %s321
        // Predicated region
        $region45: #{tpu_custom_call.1} parent=31 // pred_check
          %p323 = pneg %p108
        $region46: #{tpu_custom_call.1} parent=31 // pred_check_branch
          %325 = sbr.rel (%p323) target = $region48
        $region47: #{tpu_custom_call.1} parent=31 // pred_region
          %s326 = smul.u32 4, %s22
          %s328 = ssub.s32 256, 256
          %329 = vsyncadd %s319, %s328
          %s330 = smul.addr %s326, 64
          %s331 = scalar_lea.hbm %s3, %s330
          %s333 = sshll.u32 %s322, 4
          %s334 = int_to_ptr.vmem [resolvable:$true] %s333
          %336 = dma.vmem_to_hbm [thread:$0]  %s334, 256, %s331, %s319
        $region48: #{tpu_custom_call.1} parent=31 // pred_fallthru
          _
      $region32: #{tpu_custom_call.1} parent=5 // pred_fallthru
        _
      %p337 = scmp.le.s32.totalorder 2, %s17
      // Predicated region
      $region49: #{tpu_custom_call.1} parent=5 // pred_check
        %p338 = pneg %p337
      $region50: #{tpu_custom_call.1} parent=5 // pred_check_branch
        %340 = sbr.rel (%p338) target = $region52
      $region51: #{tpu_custom_call.1} parent=5 // pred_region
        %s341 = ssub.s32 %s17, 2
        // Predicated region
        $region53: #{tpu_custom_call.1} parent=51 // pred_check
          %p342 = pneg %p114
        $region54: #{tpu_custom_call.1} parent=51 // pred_check_branch
          %344 = sbr.rel (%p342) target = $region56
        $region55: #{tpu_custom_call.1} parent=51 // pred_region
          %s345 = sand.u32 %s99, 1
          %s346 = scalar_lea.sflag [#allocation4], %s345
          %s347 = sand.u32 %s99, 1
          %s348 = smul.addr %s347, 16
          %s349 = scalar_lea.vmem [#allocation9], %s348
          %350 = dma.done %s346, 256
        $region56: #{tpu_custom_call.1} parent=51 // pred_fallthru
          _
      $region52: #{tpu_custom_call.1} parent=5 // pred_fallthru
        _
    $region6: #{tpu_custom_call.1} parent=1 // loop_footer
      %s21 = sadd.s32 1, %s17
    $region7: #{tpu_custom_call.1} parent=1 // loop_footer_branch
      %16 = sbr.rel target = $region3
    $region8: #{tpu_custom_call.1} parent=1 // loop_exit
      _
    %351 = vsyncpa [#allocation3], 1
    %s352 = scalar_lea.sflag [#allocation3], 1
    %353 = vsyncpa %s352, 1
    %354 = vsyncpa [#allocation4], 1
    %s355 = scalar_lea.sflag [#allocation4], 1
    %356 = vsyncpa %s355, 1
    %357 = vsyncpa [#allocation5], 1
    %s358 = scalar_lea.sflag [#allocation5], 1
    %359 = vsyncpa %s358, 1
    %360 = vsyncpa [#allocation6], 1
    %s361 = scalar_lea.sflag [#allocation6], 1
    %362 = vsyncpa %s361, 1

</llo_original>
